<compile_context>
chip_gen: v7x
topology: tpu7x:2x2x1
jax: 0.10.0
libtpu: 0.0.40
codegen_flags: <defaults>
</compile_context>

<pallas_src>
import jax
import jax.numpy as jnp
from jax.experimental import pallas as pl
from jax.experimental.pallas import tpu as pltpu

REPEAT = 9  # hard-coded in the PyTorch module


def _mean_repeat_kernel(x_ref, o_ref):
    # x_ref: (TB, H, W) block in VMEM
    # o_ref: (TB, REPEAT, W) block in VMEM
    h = x_ref.shape[1]
    x = x_ref[...].astype(jnp.float32)                       # (TB, H, W)
    m = jnp.sum(x, axis=1, keepdims=True) * (1.0 / h)        # (TB, 1, W)
    o_ref[...] = jnp.broadcast_to(m, o_ref.shape).astype(o_ref.dtype)


def _choose_tb(B, H, W, itemsize, target_block_bytes):
    # ~target_block_bytes of input per grid step.
    tb = max(1, target_block_bytes // (H * W * itemsize))
    tb = min(tb, B)
    # Keep at least 2 grid steps when there is enough work, so the v7x
    # megacore (2 TCs) can split the "parallel" batch axis.
    if B >= 16:
        tb = min(tb, pl.cdiv(B, 2))
    return int(tb)


def mean_repeat(x, *, target_block_bytes=2 << 20):
    """x: (N, C, H, W) -> (N, C, 9, W), matching MeanRepeat.forward."""
    N, C, H, W = x.shape
    B = N * C
    x_flat = x.reshape(B, H, W)

    itemsize = jnp.dtype(x.dtype).itemsize
    tb = _choose_tb(B, H, W, itemsize, target_block_bytes)
    grid = (pl.cdiv(B, tb),)

    out = pl.pallas_call(
        _mean_repeat_kernel,
        out_shape=jax.ShapeDtypeStruct((B, REPEAT, W), x.dtype),
        grid=grid,
        # Last two block dims equal the full array dims -> (8,128) rule satisfied.
        in_specs=[pl.BlockSpec((tb, H, W), lambda i: (i, 0, 0))],
        out_specs=pl.BlockSpec((tb, REPEAT, W), lambda i: (i, 0, 0)),
        compiler_params=pltpu.CompilerParams(
            dimension_semantics=("parallel",),
        ),
    )(x_flat)

    return out.reshape(N, C, REPEAT, W)


def _reference(x):
    return jnp.broadcast_to(
        jnp.mean(x, axis=2, keepdims=True),
        (x.shape[0], x.shape[1], REPEAT, x.shape[3]),
    )


if __name__ == "__main__":
    key = jax.random.PRNGKey(0)

    # Case 1: shape implied by the module spec.
    N, C, H, W = 2, 4, 16, 16
    x = jax.random.normal(key, (N, C, H, W), dtype=jnp.float32)
    y = jax.block_until_ready(mean_repeat(x))
    assert y.shape == (N, C, REPEAT, W), y.shape
    assert jnp.allclose(y, _reference(x), atol=1e-5, rtol=1e-5)

    # Case 2: exercises multi-block grid + partial trailing block
    # (B=10, tb=4 -> grid=3 with a ragged last block).
    key2 = jax.random.PRNGKey(1)
    N2, C2, H2, W2 = 2, 5, 8, 128
    x2 = jax.random.normal(key2, (N2, C2, H2, W2), dtype=jnp.float32)
    y2 = jax.block_until_ready(mean_repeat(x2, target_block_bytes=16 * 1024))
    assert y2.shape == (N2, C2, REPEAT, W2), y2.shape
    assert jnp.allclose(y2, _reference(x2), atol=1e-5, rtol=1e-5)

    print("KERNEL_OK")
</pallas_src>

<mosaic_0001>
module attributes {stable_mosaic.version = 11 : i64} {
  func.func @_mean_repeat_kernel(%arg0: i32, %arg1: memref<8x16x16xf32, #tpu.memory_space<vmem>>, %arg2: memref<8x9x16xf32, #tpu.memory_space<vmem>>) attributes {dimension_semantics = [#tpu.dimension_semantics<parallel>], iteration_bounds = array<i64: 1>, scalar_prefetch = 0 : i64, scratch_operands = 0 : i64, tpu.core_type = #tpu.core_type<tc>, window_params = [{transform_indices = @transform_0, window_bounds = array<i64: 8, 16, 16>}, {transform_indices = @transform_1, window_bounds = array<i64: 8, 9, 16>}]} {
    %c0 = arith.constant 0 : index
    %c0_0 = arith.constant 0 : index
    %c0_1 = arith.constant 0 : index
    %0 = vector.load %arg1[%c0, %c0_0, %c0_1] : memref<8x16x16xf32, #tpu.memory_space<vmem>>, vector<8x16x16xf32>
    %cst = arith.constant dense<0.000000e+00> : vector<8x16xf32>
    %1 = vector.multi_reduction <add>, %0, %cst [1] : vector<8x16x16xf32> to vector<8x16xf32>
    %2 = vector.shape_cast %1 : vector<8x16xf32> to vector<8x1x16xf32>
    %cst_2 = arith.constant 6.250000e-02 : f32
    %3 = vector.broadcast %cst_2 : f32 to vector<8x1x16xf32>
    %4 = arith.mulf %2, %3 : vector<8x1x16xf32>
    %5 = vector.shape_cast %4 : vector<8x1x16xf32> to vector<8x1x16xf32>
    %6 = vector.broadcast %5 : vector<8x1x16xf32> to vector<8x9x16xf32>
    %c0_3 = arith.constant 0 : index
    %c0_4 = arith.constant 0 : index
    %c0_5 = arith.constant 0 : index
    %7 = vector.load %arg2[%c0_3, %c0_4, %c0_5] : memref<8x9x16xf32, #tpu.memory_space<vmem>>, vector<8x9x16xf32>
    tpu.vector_store %arg2[%c0_3, %c0_4, %c0_5], %6 {strides = array<i32>} : memref<8x9x16xf32, #tpu.memory_space<vmem>>, vector<8x9x16xf32>,
    return
  }
  func.func @transform_0(%arg0: i32) -> (i32, i32, i32) {
    %c0_i32 = arith.constant 0 : i32
    %c0_i32_0 = arith.constant 0 : i32
    %c0_i32_1 = arith.constant 0 : i32
    return %arg0, %c0_i32, %c0_i32_0 : i32, i32, i32
  }
  func.func @transform_1(%arg0: i32) -> (i32, i32, i32) {
    %c0_i32 = arith.constant 0 : i32
    %c0_i32_0 = arith.constant 0 : i32
    %c0_i32_1 = arith.constant 0 : i32
    return %arg0, %c0_i32, %c0_i32_0 : i32, i32, i32
  }
}

</mosaic_0001>

<llo_original>
// kernel: tpu_custom_call.1
$region0: #{tpu_custom_call.1}
  #allocation0 [shape = 'u32[]', space=smem, size = 0x4, offset = 0x4, fixed_abs, tag = 'smem constant byte address 0x4 - core index']
  #allocation1 [shape = 'u32[144,128]{1,0:T(1,128)}', space=vmem, size = 0x12000, scoped, tag = 'internal scratch']
  %s0 = inlined_call_operand.hbm [shape: f32[8,16,16], index: 0, kind: input, shape index: {}]
  %s1 = inlined_call_operand.vmem [shape: f32[8,9,16], index: 1, kind: output, shape index: {}]
  %s2 = sld [smem:[#allocation0]]
  $region18: #{tpu_custom_call.1} parent=0
    _
  %s4 = ssub.s32 1, %s2
  %s5 = scalar_select 0, %s4, %s2
  $region1: #{tpu_custom_call.1} parent=0
    #allocation2 [shape = 'u8[65536]{0}', space=vmem, size = 0x10000, scoped, tag = 'input window, operand 0, single buffered']
    #allocation3 [shape = 's32[1]{0}', space=sflag, size = 0x4, scoped, tag = 'scoped memory for tpu_custom_call.1']
    %6 = vsyncpa [#allocation3], 0
    // Predicated region
    $region2: #{tpu_custom_call.1} parent=1 // pred_check
      _
    $region3: #{tpu_custom_call.1} parent=1 // pred_check_branch
      %8 = sbr.rel (0) target = $region5
    $region4: #{tpu_custom_call.1} parent=1 // pred_region
      %s10 = ssub.s32 2048, 2048
      %11 = vsyncadd [#allocation3], %s10
      %s12 = sshll.u32 [#allocation2], 4
      %s13 = int_to_ptr.vmem [resolvable:$true] %s12
      %18 = dma.hbm_to_vmem [thread:$0]  %s0, 2048, %s13, [#allocation3], 128, 128, 8
    $region5: #{tpu_custom_call.1} parent=1 // pred_fallthru
      _
    // Predicated region
    $region6: #{tpu_custom_call.1} parent=1 // pred_check
      _
    $region7: #{tpu_custom_call.1} parent=1 // pred_check_branch
      %20 = sbr.rel (0) target = $region9
    $region8: #{tpu_custom_call.1} parent=1 // pred_region
      %21 = dma.done [#allocation3], 2048
    $region9: #{tpu_custom_call.1} parent=1 // pred_fallthru
      _
    %v22 = vld [vmem:[#allocation2] sm:$0xff]
    %v23 = vld [vmem:[#allocation2 + $0x8] sm:$0xff]
    %v24 = vld [vmem:[#allocation2 + $0x10] sm:$0xff]
    %v25 = vld [vmem:[#allocation2 + $0x18] sm:$0xff]
    %v26 = vld [vmem:[#allocation2 + $0x20] sm:$0xff]
    %v27 = vld [vmem:[#allocation2 + $0x28] sm:$0xff]
    %v28 = vld [vmem:[#allocation2 + $0x30] sm:$0xff]
    %v29 = vld [vmem:[#allocation2 + $0x38] sm:$0xff]
    %v30 = vld [vmem:[#allocation2 + $0x40] sm:$0xff]
    %v31 = vld [vmem:[#allocation2 + $0x48] sm:$0xff]
    %v32 = vld [vmem:[#allocation2 + $0x50] sm:$0xff]
    %v33 = vld [vmem:[#allocation2 + $0x58] sm:$0xff]
    %v34 = vld [vmem:[#allocation2 + $0x60] sm:$0xff]
    %v35 = vld [vmem:[#allocation2 + $0x68] sm:$0xff]
    %v36 = vld [vmem:[#allocation2 + $0x70] sm:$0xff]
    %v37 = vld [vmem:[#allocation2 + $0x78] sm:$0xff]
    %vm38 = vcmask 130048
    %v39 = vsel %vm38, %v22, 0.0
    %v40 = vsel %vm38, %v23, 0.0
    %v41 = vadd.f32 %v39, %v40
    %v42 = vrot.slane %v41, 4
    %v43 = vadd.f32 %v41, %v42
    %v44 = vrot.slane %v43, 2
    %v45 = vadd.f32 %v43, %v44
    %v46 = vrot.slane %v45, 1
    %v47 = vadd.f32 %v45, %v46
    %v48 = vsel %vm38, %v24, 0.0
    %v49 = vsel %vm38, %v25, 0.0
    %v50 = vadd.f32 %v48, %v49
    %v51 = vrot.slane %v50, 4
    %v52 = vadd.f32 %v50, %v51
    %v53 = vrot.slane %v52, 2
    %v54 = vadd.f32 %v52, %v53
    %v55 = vrot.slane %v54, 1
    %v56 = vadd.f32 %v54, %v55
    %v57 = vsel %vm38, %v26, 0.0
    %v58 = vsel %vm38, %v27, 0.0
    %v59 = vadd.f32 %v57, %v58
    %v60 = vrot.slane %v59, 4
    %v61 = vadd.f32 %v59, %v60
    %v62 = vrot.slane %v61, 2
    %v63 = vadd.f32 %v61, %v62
    %v64 = vrot.slane %v63, 1
    %v65 = vadd.f32 %v63, %v64
    %v66 = vsel %vm38, %v28, 0.0
    %v67 = vsel %vm38, %v29, 0.0
    %v68 = vadd.f32 %v66, %v67
    %v69 = vrot.slane %v68, 4
    %v70 = vadd.f32 %v68, %v69
    %v71 = vrot.slane %v70, 2
    %v72 = vadd.f32 %v70, %v71
    %v73 = vrot.slane %v72, 1
    %v74 = vadd.f32 %v72, %v73
    %v75 = vsel %vm38, %v30, 0.0
    %v76 = vsel %vm38, %v31, 0.0
    %v77 = vadd.f32 %v75, %v76
    %v78 = vrot.slane %v77, 4
    %v79 = vadd.f32 %v77, %v78
    %v80 = vrot.slane %v79, 2
    %v81 = vadd.f32 %v79, %v80
    %v82 = vrot.slane %v81, 1
    %v83 = vadd.f32 %v81, %v82
    %v84 = vsel %vm38, %v32, 0.0
    %v85 = vsel %vm38, %v33, 0.0
    %v86 = vadd.f32 %v84, %v85
    %v87 = vrot.slane %v86, 4
    %v88 = vadd.f32 %v86, %v87
    %v89 = vrot.slane %v88, 2
    %v90 = vadd.f32 %v88, %v89
    %v91 = vrot.slane %v90, 1
    %v92 = vadd.f32 %v90, %v91
    %v93 = vsel %vm38, %v34, 0.0
    %v94 = vsel %vm38, %v35, 0.0
    %v95 = vadd.f32 %v93, %v94
    %v96 = vrot.slane %v95, 4
    %v97 = vadd.f32 %v95, %v96
    %v98 = vrot.slane %v97, 2
    %v99 = vadd.f32 %v97, %v98
    %v100 = vrot.slane %v99, 1
    %v101 = vadd.f32 %v99, %v100
    %v102 = vsel %vm38, %v36, 0.0
    %v103 = vsel %vm38, %v37, 0.0
    %v104 = vadd.f32 %v102, %v103
    %v105 = vrot.slane %v104, 4
    %v106 = vadd.f32 %v104, %v105
    %v107 = vrot.slane %v106, 2
    %v108 = vadd.f32 %v106, %v107
    %v109 = vrot.slane %v108, 1
    %v110 = vadd.f32 %v108, %v109
    %v111 = vmul.f32 %v47, 0.0625
    %v112 = vmul.f32 %v56, 0.0625
    %v113 = vmul.f32 %v65, 0.0625
    %v114 = vmul.f32 %v74, 0.0625
    %v115 = vmul.f32 %v83, 0.0625
    %v116 = vmul.f32 %v92, 0.0625
    %v117 = vmul.f32 %v101, 0.0625
    %v118 = vmul.f32 %v110, 0.0625
    %119 = vst.msk [vmem:[%s1] sm:$0xff] %vm38, %v111
    %vm120 = vcmask 122880
    %121 = vst.msk [vmem:[%s1 + $0x8] sm:$0x1] %vm120, %v111
    %122 = vst.msk [vmem:[%s1 + $0x10] sm:$0xff] %vm38, %v112
    %123 = vst.msk [vmem:[%s1 + $0x18] sm:$0x1] %vm120, %v112
    %124 = vst.msk [vmem:[%s1 + $0x20] sm:$0xff] %vm38, %v113
    %125 = vst.msk [vmem:[%s1 + $0x28] sm:$0x1] %vm120, %v113
    %126 = vst.msk [vmem:[%s1 + $0x30] sm:$0xff] %vm38, %v114
    %127 = vst.msk [vmem:[%s1 + $0x38] sm:$0x1] %vm120, %v114
    %128 = vst.msk [vmem:[%s1 + $0x40] sm:$0xff] %vm38, %v115
    %129 = vst.msk [vmem:[%s1 + $0x48] sm:$0x1] %vm120, %v115
    %130 = vst.msk [vmem:[%s1 + $0x50] sm:$0xff] %vm38, %v116
    %131 = vst.msk [vmem:[%s1 + $0x58] sm:$0x1] %vm120, %v116
    %132 = vst.msk [vmem:[%s1 + $0x60] sm:$0xff] %vm38, %v117
    %133 = vst.msk [vmem:[%s1 + $0x68] sm:$0x1] %vm120, %v117
    %134 = vst.msk [vmem:[%s1 + $0x70] sm:$0xff] %vm38, %v118
    %135 = vst.msk [vmem:[%s1 + $0x78] sm:$0x1] %vm120, %v118
    // Predicated region
    $region10: #{tpu_custom_call.1} parent=1 // pred_check
      _
    $region11: #{tpu_custom_call.1} parent=1 // pred_check_branch
      %137 = sbr.rel (0) target = $region13
    $region12: #{tpu_custom_call.1} parent=1 // pred_region
      _
    $region13: #{tpu_custom_call.1} parent=1 // pred_fallthru
      _
    // Predicated region
    $region14: #{tpu_custom_call.1} parent=1 // pred_check
      _
    $region15: #{tpu_custom_call.1} parent=1 // pred_check_branch
      %139 = sbr.rel (0) target = $region17
    $region16: #{tpu_custom_call.1} parent=1 // pred_region
      _
    $region17: #{tpu_custom_call.1} parent=1 // pred_fallthru
      _
    %140 = vsyncpa [#allocation3], 1

</llo_original>
